<compile_context>
chip_gen: v7x
topology: tpu7x:2x2x1
jax: 0.10.0
libtpu: 0.0.40
codegen_flags: <defaults>
</compile_context>

<pallas_src>
import jax
import jax.numpy as jnp
import numpy as np
from jax import lax
from jax.experimental import pallas as pl
from jax.experimental.pallas import tpu as pltpu

EPS = 1e-6      # GeMP1D.eps      (clamp floor inside timeavg)
EPSILON = 1e-5  # GeMP1D.epsilon  (added under both square roots)


# ----------------------------------------------------------------------------------
# Kernel: one [BB, C, T] batch tile per grid step
# ----------------------------------------------------------------------------------
def gemp1d_kernel(x_ref, alpha_ref, gamma_ref, beta_ref, o_ref):
    """GeMP1D forward on one batch tile.

      x_ref     : [BB, C, T]   input slab (full channel / time extent)
      alpha_ref : [1,  C, 1]   GeMP1D.alpha
      gamma_ref : [1,  C, 1]   GeMP1D.gamma
      beta_ref  : [1,  C, 1]   GeMP1D.beta
      o_ref     : [BB, C, T]   x * gate
    """
    x = x_ref[...]
    xf = x.astype(jnp.float32)

    # timeavg: geometric mean over time = exp(mean_t(log(clamp(x, eps))))
    o = jnp.exp(jnp.mean(jnp.log(jnp.maximum(xf, EPS)), axis=-1, keepdims=True))  # [BB,C,1]

    # embedding = sqrt(o + epsilon) * alpha
    emb = jnp.sqrt(o + EPSILON) * alpha_ref[...]                                   # [BB,C,1]

    # norm = gamma / sqrt(mean_c(emb^2) + epsilon)   (rsqrt -> EUP, no divide)
    ms = jnp.mean(emb * emb, axis=1, keepdims=True)                                # [BB,1,1]
    norm = gamma_ref[...] * lax.rsqrt(ms + EPSILON)                                # [BB,C,1]

    # gate = 1 + tanh(emb * norm + beta);  y = x * gate  (broadcast over T lanes)
    gate = 1.0 + jnp.tanh(emb * norm + beta_ref[...])                              # [BB,C,1]
    o_ref[...] = (xf * gate).astype(o_ref.dtype)


# ----------------------------------------------------------------------------------
# Wrapper
# ----------------------------------------------------------------------------------
def _batch_tile(B, C, T, budget_bytes=8 * 1024 * 1024):
    """Largest divisor of B whose double-buffered in+out tile stays under budget."""
    per_sample = 4 * (C * T * 4)           # f32, 2 in-buffers + 2 out-buffers
    bb = max(1, min(B, budget_bytes // max(per_sample, 1)))
    while B % bb:
        bb -= 1
    return bb


def gemp1d(x, alpha, gamma, beta):
    B, C, T = x.shape
    bb = _batch_tile(B, C, T)

    x_spec = pl.BlockSpec((bb, C, T), lambda i: (i, 0, 0))
    param_spec = pl.BlockSpec((1, C, 1), lambda i: (0, 0, 0))

    return pl.pallas_call(
        gemp1d_kernel,
        grid=(B // bb,),
        in_specs=[x_spec, param_spec, param_spec, param_spec],
        out_specs=pl.BlockSpec((bb, C, T), lambda i: (i, 0, 0)),
        out_shape=jax.ShapeDtypeStruct((B, C, T), x.dtype),
        compiler_params=pltpu.CompilerParams(
            dimension_semantics=("parallel",)),
    )(x, alpha, gamma, beta)


# ----------------------------------------------------------------------------------
# Pure-JAX reference (mirror of the torch forward) for correctness checking
# ----------------------------------------------------------------------------------
def gemp1d_ref(x, alpha, gamma, beta):
    o = jnp.exp(jnp.mean(jnp.log(jnp.maximum(x, EPS)), axis=-1, keepdims=True))
    emb = jnp.sqrt(o + EPSILON) * alpha
    norm = gamma / jnp.sqrt(jnp.mean(emb ** 2, axis=1, keepdims=True) + EPSILON)
    gate = 1.0 + jnp.tanh(emb * norm + beta)
    return x * gate


if __name__ == "__main__":
    # num_channels=22 is the module default; small batch / seq for the smoke test.
    B, C, T = 4, 22, 256
    key = jax.random.PRNGKey(0)
    kx, ka, kg, kb = jax.random.split(key, 4)

    x = jax.random.normal(kx, (B, C, T), jnp.float32)
    # Perturb the (ones / zeros / zeros) torch init so the gate is non-trivial.
    alpha = 1.0 + 0.1 * jax.random.normal(ka, (1, C, 1), jnp.float32)
    gamma = 0.1 * jax.random.normal(kg, (1, C, 1), jnp.float32)
    beta = 0.1 * jax.random.normal(kb, (1, C, 1), jnp.float32)

    out = jax.block_until_ready(jax.jit(gemp1d)(x, alpha, gamma, beta))
    ref = jax.block_until_ready(jax.jit(gemp1d_ref)(x, alpha, gamma, beta))

    assert out.shape == (B, C, T), out.shape
    np.testing.assert_allclose(np.asarray(out), np.asarray(ref), rtol=1e-4, atol=1e-4)
    print("KERNEL_OK")
</pallas_src>

<mosaic_0001>
module attributes {stable_mosaic.version = 11 : i64} {
  func.func @gemp1d_kernel(%arg0: i32, %arg1: memref<4x22x256xf32, #tpu.memory_space<vmem>>, %arg2: memref<1x22x1xf32, #tpu.memory_space<vmem>>, %arg3: memref<1x22x1xf32, #tpu.memory_space<vmem>>, %arg4: memref<1x22x1xf32, #tpu.memory_space<vmem>>, %arg5: memref<4x22x256xf32, #tpu.memory_space<vmem>>) attributes {dimension_semantics = [#tpu.dimension_semantics<parallel>], iteration_bounds = array<i64: 1>, scalar_prefetch = 0 : i64, scratch_operands = 0 : i64, tpu.core_type = #tpu.core_type<tc>, window_params = [{transform_indices = @transform_0, window_bounds = array<i64: 4, 22, 256>}, {pipeline_mode = #tpu.pipeline_mode<synchronous>, transform_indices = @transform_1, window_bounds = array<i64: 1, 22, 1>}, {pipeline_mode = #tpu.pipeline_mode<synchronous>, transform_indices = @transform_2, window_bounds = array<i64: 1, 22, 1>}, {pipeline_mode = #tpu.pipeline_mode<synchronous>, transform_indices = @transform_3, window_bounds = array<i64: 1, 22, 1>}, {transform_indices = @transform_4, window_bounds = array<i64: 4, 22, 256>}]} {
    %c0 = arith.constant 0 : index
    %c0_0 = arith.constant 0 : index
    %c0_1 = arith.constant 0 : index
    %0 = vector.load %arg1[%c0, %c0_0, %c0_1] : memref<4x22x256xf32, #tpu.memory_space<vmem>>, vector<4x22x256xf32>
    %cst = arith.constant 9.99999997E-7 : f32
    %1 = vector.broadcast %cst : f32 to vector<4x22x256xf32>
    %2 = arith.maximumf %0, %1 : vector<4x22x256xf32>
    %3 = math.log %2 : vector<4x22x256xf32>
    %cst_2 = arith.constant dense<0.000000e+00> : vector<4x22xf32>
    %4 = vector.multi_reduction <add>, %3, %cst_2 [2] : vector<4x22x256xf32> to vector<4x22xf32>
    %5 = vector.shape_cast %4 : vector<4x22xf32> to vector<4x22x1xf32>
    %cst_3 = arith.constant 2.560000e+02 : f32
    %6 = vector.broadcast %cst_3 : f32 to vector<4x22x1xf32>
    %7 = arith.divf %5, %6 : vector<4x22x1xf32>
    %8 = math.exp %7 : vector<4x22x1xf32>
    %cst_4 = arith.constant 9.99999974E-6 : f32
    %9 = vector.broadcast %cst_4 : f32 to vector<4x22x1xf32>
    %10 = arith.addf %8, %9 : vector<4x22x1xf32>
    %11 = math.sqrt %10 : vector<4x22x1xf32>
    %c0_5 = arith.constant 0 : index
    %c0_6 = arith.constant 0 : index
    %c0_7 = arith.constant 0 : index
    %12 = vector.load %arg2[%c0_5, %c0_6, %c0_7] : memref<1x22x1xf32, #tpu.memory_space<vmem>>, vector<1x22x1xf32>
    %13 = vector.broadcast %12 : vector<1x22x1xf32> to vector<4x22x1xf32>
    %14 = arith.mulf %11, %13 : vector<4x22x1xf32>
    %15 = arith.mulf %14, %14 : vector<4x22x1xf32>
    %cst_8 = arith.constant dense<0.000000e+00> : vector<4x1xf32>
    %16 = vector.multi_reduction <add>, %15, %cst_8 [1] : vector<4x22x1xf32> to vector<4x1xf32>
    %17 = vector.shape_cast %16 : vector<4x1xf32> to vector<4x1x1xf32>
    %cst_9 = arith.constant 2.200000e+01 : f32
    %18 = vector.broadcast %cst_9 : f32 to vector<4x1x1xf32>
    %19 = arith.divf %17, %18 : vector<4x1x1xf32>
    %c0_10 = arith.constant 0 : index
    %c0_11 = arith.constant 0 : index
    %c0_12 = arith.constant 0 : index
    %20 = vector.load %arg3[%c0_10, %c0_11, %c0_12] : memref<1x22x1xf32, #tpu.memory_space<vmem>>, vector<1x22x1xf32>
    %cst_13 = arith.constant 9.99999974E-6 : f32
    %21 = vector.broadcast %cst_13 : f32 to vector<4x1x1xf32>
    %22 = arith.addf %19, %21 : vector<4x1x1xf32>
    %23 = math.rsqrt %22 : vector<4x1x1xf32>
    %24 = vector.broadcast %20 : vector<1x22x1xf32> to vector<4x22x1xf32>
    %25 = vector.broadcast %23 : vector<4x1x1xf32> to vector<4x22x1xf32>
    %26 = arith.mulf %24, %25 : vector<4x22x1xf32>
    %27 = arith.mulf %14, %26 : vector<4x22x1xf32>
    %c0_14 = arith.constant 0 : index
    %c0_15 = arith.constant 0 : index
    %c0_16 = arith.constant 0 : index
    %28 = vector.load %arg4[%c0_14, %c0_15, %c0_16] : memref<1x22x1xf32, #tpu.memory_space<vmem>>, vector<1x22x1xf32>
    %29 = vector.broadcast %28 : vector<1x22x1xf32> to vector<4x22x1xf32>
    %30 = arith.addf %27, %29 : vector<4x22x1xf32>
    %31 = math.tanh %30 : vector<4x22x1xf32>
    %cst_17 = arith.constant 1.000000e+00 : f32
    %32 = vector.broadcast %cst_17 : f32 to vector<4x22x1xf32>
    %33 = arith.addf %32, %31 : vector<4x22x1xf32>
    %34 = vector.broadcast %33 : vector<4x22x1xf32> to vector<4x22x256xf32>
    %35 = arith.mulf %0, %34 : vector<4x22x256xf32>
    %c0_18 = arith.constant 0 : index
    %c0_19 = arith.constant 0 : index
    %c0_20 = arith.constant 0 : index
    %36 = vector.load %arg5[%c0_18, %c0_19, %c0_20] : memref<4x22x256xf32, #tpu.memory_space<vmem>>, vector<4x22x256xf32>
    tpu.vector_store %arg5[%c0_18, %c0_19, %c0_20], %35 {strides = array<i32>} : memref<4x22x256xf32, #tpu.memory_space<vmem>>, vector<4x22x256xf32>,
    return
  }
  func.func @transform_0(%arg0: i32) -> (i32, i32, i32) {
    %c0_i32 = arith.constant 0 : i32
    %c0_i32_0 = arith.constant 0 : i32
    %c0_i32_1 = arith.constant 0 : i32
    return %arg0, %c0_i32, %c0_i32_0 : i32, i32, i32
  }
  func.func @transform_1(%arg0: i32) -> (i32, i32, i32) {
    %c0_i32 = arith.constant 0 : i32
    %c0_i32_0 = arith.constant 0 : i32
    %c0_i32_1 = arith.constant 0 : i32
    %c0_i32_2 = arith.constant 0 : i32
    return %c0_i32, %c0_i32_0, %c0_i32_1 : i32, i32, i32
  }
  func.func @transform_2(%arg0: i32) -> (i32, i32, i32) {
    %c0_i32 = arith.constant 0 : i32
    %c0_i32_0 = arith.constant 0 : i32
    %c0_i32_1 = arith.constant 0 : i32
    %c0_i32_2 = arith.constant 0 : i32
    return %c0_i32, %c0_i32_0, %c0_i32_1 : i32, i32, i32
  }
  func.func @transform_3(%arg0: i32) -> (i32, i32, i32) {
    %c0_i32 = arith.constant 0 : i32
    %c0_i32_0 = arith.constant 0 : i32
    %c0_i32_1 = arith.constant 0 : i32
    %c0_i32_2 = arith.constant 0 : i32
    return %c0_i32, %c0_i32_0, %c0_i32_1 : i32, i32, i32
  }
  func.func @transform_4(%arg0: i32) -> (i32, i32, i32) {
    %c0_i32 = arith.constant 0 : i32
    %c0_i32_0 = arith.constant 0 : i32
    %c0_i32_1 = arith.constant 0 : i32
    return %arg0, %c0_i32, %c0_i32_0 : i32, i32, i32
  }
}

</mosaic_0001>

<llo_original>
// kernel: gemp1d.1
$region0: #{gemp1d.1}
  #allocation0 [shape = 'u32[]', space=smem, size = 0x4, offset = 0x4, fixed_abs, tag = 'smem constant byte address 0x4 - core index']
  #allocation1 [shape = 'u32[144,128]{1,0:T(1,128)}', space=vmem, size = 0x12000, scoped, tag = 'internal scratch']
  %s0 = inlined_call_operand.vmem [shape: f32[4,22,256], index: 0, kind: input, shape index: {}]
  %s1 = inlined_call_operand.vmem [shape: f32[1,22,1], index: 1, kind: input, shape index: {}]
  %s2 = inlined_call_operand.vmem [shape: f32[1,22,1], index: 2, kind: input, shape index: {}]
  %s3 = inlined_call_operand.vmem [shape: f32[1,22,1], index: 3, kind: input, shape index: {}]
  %s4 = inlined_call_operand.vmem [shape: f32[4,22,256], index: 4, kind: output, shape index: {}]
  %s5 = sld [smem:[#allocation0]]
  $region26: #{gemp1d.1} parent=0
    _
  %s7 = ssub.s32 1, %s5
  %s8 = scalar_select 0, %s7, %s5
  // Predicated region
  $region2: #{gemp1d.1} parent=0 // pred_check
    _
  $region3: #{gemp1d.1} parent=0 // pred_check_branch
    %10 = sbr.rel (0) target = $region5
  $region4: #{gemp1d.1} parent=0 // pred_region
    _
  $region5: #{gemp1d.1} parent=0 // pred_fallthru
    _
  // Predicated region
  $region6: #{gemp1d.1} parent=0 // pred_check
    _
  $region7: #{gemp1d.1} parent=0 // pred_check_branch
    %12 = sbr.rel (0) target = $region9
  $region8: #{gemp1d.1} parent=0 // pred_region
    _
  $region9: #{gemp1d.1} parent=0 // pred_fallthru
    _
  // Predicated region
  $region10: #{gemp1d.1} parent=0 // pred_check
    _
  $region11: #{gemp1d.1} parent=0 // pred_check_branch
    %14 = sbr.rel (0) target = $region13
  $region12: #{gemp1d.1} parent=0 // pred_region
    _
  $region13: #{gemp1d.1} parent=0 // pred_fallthru
    _
  // Predicated region
  $region14: #{gemp1d.1} parent=0 // pred_check
    _
  $region15: #{gemp1d.1} parent=0 // pred_check_branch
    %16 = sbr.rel (0) target = $region17
  $region16: #{gemp1d.1} parent=0 // pred_region
    _
  $region17: #{gemp1d.1} parent=0 // pred_fallthru
    _
  %v17 = vld [vmem:[%s0] sm:$0xff]
  %v18 = vld [vmem:[%s0 + $0x8] sm:$0xff]
  %v19 = vld [vmem:[%s0 + $0x10] sm:$0xff]
  %v20 = vld [vmem:[%s0 + $0x18] sm:$0xff]
  %v21 = vld [vmem:[%s0 + $0x20] sm:$0x3f]
  %v22 = vld [vmem:[%s0 + $0x28] sm:$0x3f]
  %v23 = vld [vmem:[%s0 + $0x30] sm:$0xff]
  %v24 = vld [vmem:[%s0 + $0x38] sm:$0xff]
  %v25 = vld [vmem:[%s0 + $0x40] sm:$0xff]
  %v26 = vld [vmem:[%s0 + $0x48] sm:$0xff]
  %v27 = vld [vmem:[%s0 + $0x50] sm:$0x3f]
  %v28 = vld [vmem:[%s0 + $0x58] sm:$0x3f]
  %v29 = vld [vmem:[%s0 + $0x60] sm:$0xff]
  %v30 = vld [vmem:[%s0 + $0x68] sm:$0xff]
  %v31 = vld [vmem:[%s0 + $0x70] sm:$0xff]
  %v32 = vld [vmem:[%s0 + $0x78] sm:$0xff]
  %v33 = vld [vmem:[%s0 + $0x80] sm:$0x3f]
  %v34 = vld [vmem:[%s0 + $0x88] sm:$0x3f]
  %v35 = vld [vmem:[%s0 + $0x90] sm:$0xff]
  %v36 = vld [vmem:[%s0 + $0x98] sm:$0xff]
  %v37 = vld [vmem:[%s0 + $0xa0] sm:$0xff]
  %v38 = vld [vmem:[%s0 + $0xa8] sm:$0xff]
  %v39 = vld [vmem:[%s0 + $0xb0] sm:$0x3f]
  %v40 = vld [vmem:[%s0 + $0xb8] sm:$0x3f]
  %v41 = vmax.f32 %v17, 1e-06
  %v42 = vmax.f32 %v18, 1e-06
  %v43 = vmax.f32 %v19, 1e-06
  %v44 = vmax.f32 %v20, 1e-06
  %v45 = vmax.f32 %v21, 1e-06
  %v46 = vmax.f32 %v22, 1e-06
  %v47 = vmax.f32 %v23, 1e-06
  %v48 = vmax.f32 %v24, 1e-06
  %v49 = vmax.f32 %v25, 1e-06
  %v50 = vmax.f32 %v26, 1e-06
  %v51 = vmax.f32 %v27, 1e-06
  %v52 = vmax.f32 %v28, 1e-06
  %v53 = vmax.f32 %v29, 1e-06
  %v54 = vmax.f32 %v30, 1e-06
  %v55 = vmax.f32 %v31, 1e-06
  %v56 = vmax.f32 %v32, 1e-06
  %v57 = vmax.f32 %v33, 1e-06
  %v58 = vmax.f32 %v34, 1e-06
  %v59 = vmax.f32 %v35, 1e-06
  %v60 = vmax.f32 %v36, 1e-06
  %v61 = vmax.f32 %v37, 1e-06
  %v62 = vmax.f32 %v38, 1e-06
  %v63 = vmax.f32 %v39, 1e-06
  %v64 = vmax.f32 %v40, 1e-06
  %v65 = vlog2.pop %v41
  %v66 = vmul.f32 %v65, 0.6931472
  %v67 = vlog2.pop %v42
  %v68 = vmul.f32 %v67, 0.6931472
  %v69 = vlog2.pop %v43
  %v70 = vmul.f32 %v69, 0.6931472
  %v71 = vlog2.pop %v44
  %v72 = vmul.f32 %v71, 0.6931472
  %v73 = vlog2.pop %v45
  %v74 = vmul.f32 %v73, 0.6931472
  %v75 = vlog2.pop %v46
  %v76 = vmul.f32 %v75, 0.6931472
  %v77 = vlog2.pop %v47
  %v78 = vmul.f32 %v77, 0.6931472
  %v79 = vlog2.pop %v48
  %v80 = vmul.f32 %v79, 0.6931472
  %v81 = vlog2.pop %v49
  %v82 = vmul.f32 %v81, 0.6931472
  %v83 = vlog2.pop %v50
  %v84 = vmul.f32 %v83, 0.6931472
  %v85 = vlog2.pop %v51
  %v86 = vmul.f32 %v85, 0.6931472
  %v87 = vlog2.pop %v52
  %v88 = vmul.f32 %v87, 0.6931472
  %v89 = vlog2.pop %v53
  %v90 = vmul.f32 %v89, 0.6931472
  %v91 = vlog2.pop %v54
  %v92 = vmul.f32 %v91, 0.6931472
  %v93 = vlog2.pop %v55
  %v94 = vmul.f32 %v93, 0.6931472
  %v95 = vlog2.pop %v56
  %v96 = vmul.f32 %v95, 0.6931472
  %v97 = vlog2.pop %v57
  %v98 = vmul.f32 %v97, 0.6931472
  %v99 = vlog2.pop %v58
  %v100 = vmul.f32 %v99, 0.6931472
  %v101 = vlog2.pop %v59
  %v102 = vmul.f32 %v101, 0.6931472
  %v103 = vlog2.pop %v60
  %v104 = vmul.f32 %v103, 0.6931472
  %v105 = vlog2.pop %v61
  %v106 = vmul.f32 %v105, 0.6931472
  %v107 = vlog2.pop %v62
  %v108 = vmul.f32 %v107, 0.6931472
  %v109 = vlog2.pop %v63
  %v110 = vmul.f32 %v109, 0.6931472
  %v111 = vlog2.pop %v64
  %v112 = vmul.f32 %v111, 0.6931472
  %v113 = vadd.f32 %v66, %v68
  %114 = vadd.xlane.f32.xlu0 %v113
  %v115 = vpop.xlane.xlu0 %114
  %v116 = vadd.f32 %v70, %v72
  %117 = vadd.xlane.f32.xlu0 %v116
  %v118 = vpop.xlane.xlu0 %117
  %vm119 = vcmask 1045504
  %v120 = vsel %vm119, %v74, 0.0
  %v121 = vsel %vm119, %v76, 0.0
  %v122 = vadd.f32 %v120, %v121
  %123 = vadd.xlane.f32.xlu0 %v122
  %v124 = vpop.xlane.xlu0 %123
  %v125 = vadd.f32 %v78, %v80
  %126 = vadd.xlane.f32.xlu0 %v125
  %v127 = vpop.xlane.xlu0 %126
  %v128 = vadd.f32 %v82, %v84
  %129 = vadd.xlane.f32.xlu0 %v128
  %v130 = vpop.xlane.xlu0 %129
  %v131 = vsel %vm119, %v86, 0.0
  %v132 = vsel %vm119, %v88, 0.0
  %v133 = vadd.f32 %v131, %v132
  %134 = vadd.xlane.f32.xlu0 %v133
  %v135 = vpop.xlane.xlu0 %134
  %v136 = vadd.f32 %v90, %v92
  %137 = vadd.xlane.f32.xlu0 %v136
  %v138 = vpop.xlane.xlu0 %137
  %v139 = vadd.f32 %v94, %v96
  %140 = vadd.xlane.f32.xlu0 %v139
  %v141 = vpop.xlane.xlu0 %140
  %v142 = vsel %vm119, %v98, 0.0
  %v143 = vsel %vm119, %v100, 0.0
  %v144 = vadd.f32 %v142, %v143
  %145 = vadd.xlane.f32.xlu0 %v144
  %v146 = vpop.xlane.xlu0 %145
  %v147 = vadd.f32 %v102, %v104
  %148 = vadd.xlane.f32.xlu0 %v147
  %v149 = vpop.xlane.xlu0 %148
  %v150 = vadd.f32 %v106, %v108
  %151 = vadd.xlane.f32.xlu0 %v150
  %v152 = vpop.xlane.xlu0 %151
  %v153 = vsel %vm119, %v110, 0.0
  %v154 = vsel %vm119, %v112, 0.0
  %v155 = vadd.f32 %v153, %v154
  %156 = vadd.xlane.f32.xlu0 %v155
  %v157 = vpop.xlane.xlu0 %156
  %v158 = vrcp.pop 256.0
  %v159 = vmul.f32 %v115, %v158
  %v160 = vmul.f32 %v118, %v158
  %v161 = vmul.f32 %v124, %v158
  %v162 = vmul.f32 %v127, %v158
  %v163 = vmul.f32 %v130, %v158
  %v164 = vmul.f32 %v135, %v158
  %v165 = vmul.f32 %v138, %v158
  %v166 = vmul.f32 %v141, %v158
  %v167 = vmul.f32 %v146, %v158
  %v168 = vmul.f32 %v149, %v158
  %v169 = vmul.f32 %v152, %v158
  %v170 = vmul.f32 %v157, %v158
  %v171 = vmul.f32 %v159, 1.442695
  %v172 = vpow.pop %v171
  %v173 = vmul.f32 %v160, 1.442695
  %v174 = vpow.pop %v173
  %v175 = vmul.f32 %v161, 1.442695
  %v176 = vpow.pop %v175
  %v177 = vmul.f32 %v162, 1.442695
  %v178 = vpow.pop %v177
  %v179 = vmul.f32 %v163, 1.442695
  %v180 = vpow.pop %v179
  %v181 = vmul.f32 %v164, 1.442695
  %v182 = vpow.pop %v181
  %v183 = vmul.f32 %v165, 1.442695
  %v184 = vpow.pop %v183
  %v185 = vmul.f32 %v166, 1.442695
  %v186 = vpow.pop %v185
  %v187 = vmul.f32 %v167, 1.442695
  %v188 = vpow.pop %v187
  %v189 = vmul.f32 %v168, 1.442695
  %v190 = vpow.pop %v189
  %v191 = vmul.f32 %v169, 1.442695
  %v192 = vpow.pop %v191
  %v193 = vmul.f32 %v170, 1.442695
  %v194 = vpow.pop %v193
  %v195 = vadd.f32 %v172, 1e-05
  %v196 = vadd.f32 %v174, 1e-05
  %v197 = vadd.f32 %v176, 1e-05
  %v198 = vadd.f32 %v178, 1e-05
  %v199 = vadd.f32 %v180, 1e-05
  %v200 = vadd.f32 %v182, 1e-05
  %v201 = vadd.f32 %v184, 1e-05
  %v202 = vadd.f32 %v186, 1e-05
  %v203 = vadd.f32 %v188, 1e-05
  %v204 = vadd.f32 %v190, 1e-05
  %v205 = vadd.f32 %v192, 1e-05
  %v206 = vadd.f32 %v194, 1e-05
  %v207 = vrsqrt.pop %v195
  %v208 = vmul.f32 %v195, %v207
  %vm209 = vcmp.eq.f32.partialorder %v195, inf
  %v210 = vsel %vm209, %v195, %v208
  %vm211 = vcmp.eq.f32.partialorder %v195, 0.0
  %v212 = vand.u32 %v195, 2147483648
  %v213 = vsel %vm211, %v212, %v210
  %v214 = vrsqrt.pop %v196
  %v215 = vmul.f32 %v196, %v214
  %vm216 = vcmp.eq.f32.partialorder %v196, inf
  %v217 = vsel %vm216, %v196, %v215
  %vm218 = vcmp.eq.f32.partialorder %v196, 0.0
  %v219 = vand.u32 %v196, 2147483648
  %v220 = vsel %vm218, %v219, %v217
  %v221 = vrsqrt.pop %v197
  %v222 = vmul.f32 %v197, %v221
  %vm223 = vcmp.eq.f32.partialorder %v197, inf
  %v224 = vsel %vm223, %v197, %v222
  %vm225 = vcmp.eq.f32.partialorder %v197, 0.0
  %v226 = vand.u32 %v197, 2147483648
  %v227 = vsel %vm225, %v226, %v224
  %v228 = vrsqrt.pop %v198
  %v229 = vmul.f32 %v198, %v228
  %vm230 = vcmp.eq.f32.partialorder %v198, inf
  %v231 = vsel %vm230, %v198, %v229
  %vm232 = vcmp.eq.f32.partialorder %v198, 0.0
  %v233 = vand.u32 %v198, 2147483648
  %v234 = vsel %vm232, %v233, %v231
  %v235 = vrsqrt.pop %v199
  %v236 = vmul.f32 %v199, %v235
  %vm237 = vcmp.eq.f32.partialorder %v199, inf
  %v238 = vsel %vm237, %v199, %v236
  %vm239 = vcmp.eq.f32.partialorder %v199, 0.0
  %v240 = vand.u32 %v199, 2147483648
  %v241 = vsel %vm239, %v240, %v238
  %v242 = vrsqrt.pop %v200
  %v243 = vmul.f32 %v200, %v242
  %vm244 = vcmp.eq.f32.partialorder %v200, inf
  %v245 = vsel %vm244, %v200, %v243
  %vm246 = vcmp.eq.f32.partialorder %v200, 0.0
  %v247 = vand.u32 %v200, 2147483648
  %v248 = vsel %vm246, %v247, %v245
  %v249 = vrsqrt.pop %v201
  %v250 = vmul.f32 %v201, %v249
  %vm251 = vcmp.eq.f32.partialorder %v201, inf
  %v252 = vsel %vm251, %v201, %v250
  %vm253 = vcmp.eq.f32.partialorder %v201, 0.0
  %v254 = vand.u32 %v201, 2147483648
  %v255 = vsel %vm253, %v254, %v252
  %v256 = vrsqrt.pop %v202
  %v257 = vmul.f32 %v202, %v256
  %vm258 = vcmp.eq.f32.partialorder %v202, inf
  %v259 = vsel %vm258, %v202, %v257
  %vm260 = vcmp.eq.f32.partialorder %v202, 0.0
  %v261 = vand.u32 %v202, 2147483648
  %v262 = vsel %vm260, %v261, %v259
  %v263 = vrsqrt.pop %v203
  %v264 = vmul.f32 %v203, %v263
  %vm265 = vcmp.eq.f32.partialorder %v203, inf
  %v266 = vsel %vm265, %v203, %v264
  %vm267 = vcmp.eq.f32.partialorder %v203, 0.0
  %v268 = vand.u32 %v203, 2147483648
  %v269 = vsel %vm267, %v268, %v266
  %v270 = vrsqrt.pop %v204
  %v271 = vmul.f32 %v204, %v270
  %vm272 = vcmp.eq.f32.partialorder %v204, inf
  %v273 = vsel %vm272, %v204, %v271
  %vm274 = vcmp.eq.f32.partialorder %v204, 0.0
  %v275 = vand.u32 %v204, 2147483648
  %v276 = vsel %vm274, %v275, %v273
  %v277 = vrsqrt.pop %v205
  %v278 = vmul.f32 %v205, %v277
  %vm279 = vcmp.eq.f32.partialorder %v205, inf
  %v280 = vsel %vm279, %v205, %v278
  %vm281 = vcmp.eq.f32.partialorder %v205, 0.0
  %v282 = vand.u32 %v205, 2147483648
  %v283 = vsel %vm281, %v282, %v280
  %v284 = vrsqrt.pop %v206
  %v285 = vmul.f32 %v206, %v284
  %vm286 = vcmp.eq.f32.partialorder %v206, inf
  %v287 = vsel %vm286, %v206, %v285
  %vm288 = vcmp.eq.f32.partialorder %v206, 0.0
  %v289 = vand.u32 %v206, 2147483648
  %v290 = vsel %vm288, %v289, %v287
  %v291 = vld [vmem:[%s1] sm:$0xff]
  %v292 = vld [vmem:[%s1 + $0x8] sm:$0xff]
  %v293 = vld [vmem:[%s1 + $0x10] sm:$0x3f]
  %v294 = vmul.f32 %v213, %v291
  %v295 = vmul.f32 %v220, %v292
  %v296 = vmul.f32 %v227, %v293
  %v297 = vmul.f32 %v234, %v291
  %v298 = vmul.f32 %v241, %v292
  %v299 = vmul.f32 %v248, %v293
  %v300 = vmul.f32 %v255, %v291
  %v301 = vmul.f32 %v262, %v292
  %v302 = vmul.f32 %v269, %v293
  %v303 = vmul.f32 %v276, %v291
  %v304 = vmul.f32 %v283, %v292
  %v305 = vmul.f32 %v290, %v293
  %v306 = vmul.f32 %v294, %v294
  %v307 = vmul.f32 %v295, %v295
  %v308 = vmul.f32 %v296, %v296
  %v309 = vmul.f32 %v297, %v297
  %v310 = vmul.f32 %v298, %v298
  %v311 = vmul.f32 %v299, %v299
  %v312 = vmul.f32 %v300, %v300
  %v313 = vmul.f32 %v301, %v301
  %v314 = vmul.f32 %v302, %v302
  %v315 = vmul.f32 %v303, %v303
  %v316 = vmul.f32 %v304, %v304
  %v317 = vmul.f32 %v305, %v305
  %vm318 = vcmask 7168
  %v319 = vsel %vm318, %v306, 0.0
  %v320 = vsel %vm318, %v307, 0.0
  %v321 = vadd.f32 %v319, %v320
  %vm322 = vcmask 5120
  %v323 = vsel %vm322, %v308, 0.0
  %v324 = vadd.f32 %v321, %v323
  %v325 = vrot.slane %v324, 4
  %v326 = vadd.f32 %v324, %v325
  %v327 = vrot.slane %v326, 2
  %v328 = vadd.f32 %v326, %v327
  %v329 = vrot.slane %v328, 1
  %v330 = vadd.f32 %v328, %v329
  %v331 = vsel %vm318, %v309, 0.0
  %v332 = vsel %vm318, %v310, 0.0
  %v333 = vadd.f32 %v331, %v332
  %v334 = vsel %vm322, %v311, 0.0
  %v335 = vadd.f32 %v333, %v334
  %v336 = vrot.slane %v335, 4
  %v337 = vadd.f32 %v335, %v336
  %v338 = vrot.slane %v337, 2
  %v339 = vadd.f32 %v337, %v338
  %v340 = vrot.slane %v339, 1
  %v341 = vadd.f32 %v339, %v340
  %v342 = vsel %vm318, %v312, 0.0
  %v343 = vsel %vm318, %v313, 0.0
  %v344 = vadd.f32 %v342, %v343
  %v345 = vsel %vm322, %v314, 0.0
  %v346 = vadd.f32 %v344, %v345
  %v347 = vrot.slane %v346, 4
  %v348 = vadd.f32 %v346, %v347
  %v349 = vrot.slane %v348, 2
  %v350 = vadd.f32 %v348, %v349
  %v351 = vrot.slane %v350, 1
  %v352 = vadd.f32 %v350, %v351
  %v353 = vsel %vm318, %v315, 0.0
  %v354 = vsel %vm318, %v316, 0.0
  %v355 = vadd.f32 %v353, %v354
  %v356 = vsel %vm322, %v317, 0.0
  %v357 = vadd.f32 %v355, %v356
  %v358 = vrot.slane %v357, 4
  %v359 = vadd.f32 %v357, %v358
  %v360 = vrot.slane %v359, 2
  %v361 = vadd.f32 %v359, %v360
  %v362 = vrot.slane %v361, 1
  %v363 = vadd.f32 %v361, %v362
  %v364 = vrcp.pop 22.0
  %v365 = vmul.f32 %v330, %v364
  %v366 = vmul.f32 %v341, %v364
  %v367 = vmul.f32 %v352, %v364
  %v368 = vmul.f32 %v363, %v364
  %v369 = vld [vmem:[%s2] sm:$0xff]
  %v370 = vld [vmem:[%s2 + $0x8] sm:$0xff]
  %v371 = vld [vmem:[%s2 + $0x10] sm:$0x3f]
  %v372 = vadd.f32 %v365, 1e-05
  %v373 = vadd.f32 %v366, 1e-05
  %v374 = vadd.f32 %v367, 1e-05
  %v375 = vadd.f32 %v368, 1e-05
  %v376 = vrsqrt.pop %v372
  %v377 = vrsqrt.pop %v373
  %v378 = vrsqrt.pop %v374
  %v379 = vrsqrt.pop %v375
  %v380 = vmul.f32 %v369, %v376
  %v381 = vmul.f32 %v370, %v376
  %v382 = vmul.f32 %v371, %v376
  %v383 = vmul.f32 %v369, %v377
  %v384 = vmul.f32 %v370, %v377
  %v385 = vmul.f32 %v371, %v377
  %v386 = vmul.f32 %v369, %v378
  %v387 = vmul.f32 %v370, %v378
  %v388 = vmul.f32 %v371, %v378
  %v389 = vmul.f32 %v369, %v379
  %v390 = vmul.f32 %v370, %v379
  %v391 = vmul.f32 %v371, %v379
  %v392 = vmul.f32 %v294, %v380
  %v393 = vmul.f32 %v295, %v381
  %v394 = vmul.f32 %v296, %v382
  %v395 = vmul.f32 %v297, %v383
  %v396 = vmul.f32 %v298, %v384
  %v397 = vmul.f32 %v299, %v385
  %v398 = vmul.f32 %v300, %v386
  %v399 = vmul.f32 %v301, %v387
  %v400 = vmul.f32 %v302, %v388
  %v401 = vmul.f32 %v303, %v389
  %v402 = vmul.f32 %v304, %v390
  %v403 = vmul.f32 %v305, %v391
  %v404 = vld [vmem:[%s3] sm:$0xff]
  %v405 = vld [vmem:[%s3 + $0x8] sm:$0xff]
  %v406 = vld [vmem:[%s3 + $0x10] sm:$0x3f]
  %v407 = vadd.f32 %v392, %v404
  %v408 = vadd.f32 %v393, %v405
  %v409 = vadd.f32 %v394, %v406
  %v410 = vadd.f32 %v395, %v404
  %v411 = vadd.f32 %v396, %v405
  %v412 = vadd.f32 %v397, %v406
  %v413 = vadd.f32 %v398, %v404
  %v414 = vadd.f32 %v399, %v405
  %v415 = vadd.f32 %v400, %v406
  %v416 = vadd.f32 %v401, %v404
  %v417 = vadd.f32 %v402, %v405
  %v418 = vadd.f32 %v403, %v406
  %v419 = vtanh.pop %v407
  %v420 = vtanh.pop %v408
  %v421 = vtanh.pop %v409
  %v422 = vtanh.pop %v410
  %v423 = vtanh.pop %v411
  %v424 = vtanh.pop %v412
  %v425 = vtanh.pop %v413
  %v426 = vtanh.pop %v414
  %v427 = vtanh.pop %v415
  %v428 = vtanh.pop %v416
  %v429 = vtanh.pop %v417
  %v430 = vtanh.pop %v418
  %v431 = vadd.f32 %v419, 1.0
  %v432 = vadd.f32 %v420, 1.0
  %v433 = vadd.f32 %v421, 1.0
  %v434 = vadd.f32 %v422, 1.0
  %v435 = vadd.f32 %v423, 1.0
  %v436 = vadd.f32 %v424, 1.0
  %v437 = vadd.f32 %v425, 1.0
  %v438 = vadd.f32 %v426, 1.0
  %v439 = vadd.f32 %v427, 1.0
  %v440 = vadd.f32 %v428, 1.0
  %v441 = vadd.f32 %v429, 1.0
  %v442 = vadd.f32 %v430, 1.0
  %444 = vset.pattern.permute.xlu0 0
  %445 = vperm.xlu0 %444, %v431
  %v446 = vpop.permute.xlu0 %445
  %449 = vset.pattern.permute.xlu0 0
  %450 = vperm.xlu0 %449, %v432
  %v451 = vpop.permute.xlu0 %450
  %454 = vset.pattern.permute.xlu0 0
  %455 = vperm.xlu0 %454, %v433
  %v456 = vpop.permute.xlu0 %455
  %459 = vset.pattern.permute.xlu0 0
  %460 = vperm.xlu0 %459, %v434
  %v461 = vpop.permute.xlu0 %460
  %464 = vset.pattern.permute.xlu0 0
  %465 = vperm.xlu0 %464, %v435
  %v466 = vpop.permute.xlu0 %465
  %469 = vset.pattern.permute.xlu0 0
  %470 = vperm.xlu0 %469, %v436
  %v471 = vpop.permute.xlu0 %470
  %474 = vset.pattern.permute.xlu0 0
  %475 = vperm.xlu0 %474, %v437
  %v476 = vpop.permute.xlu0 %475
  %479 = vset.pattern.permute.xlu0 0
  %480 = vperm.xlu0 %479, %v438
  %v481 = vpop.permute.xlu0 %480
  %484 = vset.pattern.permute.xlu0 0
  %485 = vperm.xlu0 %484, %v439
  %v486 = vpop.permute.xlu0 %485
  %489 = vset.pattern.permute.xlu0 0
  %490 = vperm.xlu0 %489, %v440
  %v491 = vpop.permute.xlu0 %490
  %494 = vset.pattern.permute.xlu0 0
  %495 = vperm.xlu0 %494, %v441
  %v496 = vpop.permute.xlu0 %495
  %499 = vset.pattern.permute.xlu0 0
  %500 = vperm.xlu0 %499, %v442
  %v501 = vpop.permute.xlu0 %500
  %v503 = vmul.f32 %v17, %v446
  %v504 = vmul.f32 %v18, %v446
  %v505 = vmul.f32 %v19, %v451
  %v506 = vmul.f32 %v20, %v451
  %v507 = vmul.f32 %v21, %v456
  %v508 = vmul.f32 %v22, %v456
  %v509 = vmul.f32 %v23, %v461
  %v510 = vmul.f32 %v24, %v461
  %v511 = vmul.f32 %v25, %v466
  %v512 = vmul.f32 %v26, %v466
  %v513 = vmul.f32 %v27, %v471
  %v514 = vmul.f32 %v28, %v471
  %v515 = vmul.f32 %v29, %v476
  %v516 = vmul.f32 %v30, %v476
  %v517 = vmul.f32 %v31, %v481
  %v518 = vmul.f32 %v32, %v481
  %v519 = vmul.f32 %v33, %v486
  %v520 = vmul.f32 %v34, %v486
  %v521 = vmul.f32 %v35, %v491
  %v522 = vmul.f32 %v36, %v491
  %v523 = vmul.f32 %v37, %v496
  %v524 = vmul.f32 %v38, %v496
  %v525 = vmul.f32 %v39, %v501
  %v526 = vmul.f32 %v40, %v501
  %527 = vst [vmem:[%s4] sm:$0xff] %v503
  %528 = vst [vmem:[%s4 + $0x8] sm:$0xff] %v504
  %529 = vst [vmem:[%s4 + $0x10] sm:$0xff] %v505
  %530 = vst [vmem:[%s4 + $0x18] sm:$0xff] %v506
  %531 = vst [vmem:[%s4 + $0x20] sm:$0x3f] %v507
  %532 = vst [vmem:[%s4 + $0x28] sm:$0x3f] %v508
  %533 = vst [vmem:[%s4 + $0x30] sm:$0xff] %v509
  %534 = vst [vmem:[%s4 + $0x38] sm:$0xff] %v510
  %535 = vst [vmem:[%s4 + $0x40] sm:$0xff] %v511
  %536 = vst [vmem:[%s4 + $0x48] sm:$0xff] %v512
  %537 = vst [vmem:[%s4 + $0x50] sm:$0x3f] %v513
  %538 = vst [vmem:[%s4 + $0x58] sm:$0x3f] %v514
  %539 = vst [vmem:[%s4 + $0x60] sm:$0xff] %v515
  %540 = vst [vmem:[%s4 + $0x68] sm:$0xff] %v516
  %541 = vst [vmem:[%s4 + $0x70] sm:$0xff] %v517
  %542 = vst [vmem:[%s4 + $0x78] sm:$0xff] %v518
  %543 = vst [vmem:[%s4 + $0x80] sm:$0x3f] %v519
  %544 = vst [vmem:[%s4 + $0x88] sm:$0x3f] %v520
  %545 = vst [vmem:[%s4 + $0x90] sm:$0xff] %v521
  %546 = vst [vmem:[%s4 + $0x98] sm:$0xff] %v522
  %547 = vst [vmem:[%s4 + $0xa0] sm:$0xff] %v523
  %548 = vst [vmem:[%s4 + $0xa8] sm:$0xff] %v524
  %549 = vst [vmem:[%s4 + $0xb0] sm:$0x3f] %v525
  %550 = vst [vmem:[%s4 + $0xb8] sm:$0x3f] %v526
  // Predicated region
  $region18: #{gemp1d.1} parent=0 // pred_check
    _
  $region19: #{gemp1d.1} parent=0 // pred_check_branch
    %552 = sbr.rel (0) target = $region21
  $region20: #{gemp1d.1} parent=0 // pred_region
    _
  $region21: #{gemp1d.1} parent=0 // pred_fallthru
    _
  // Predicated region
  $region22: #{gemp1d.1} parent=0 // pred_check
    _
  $region23: #{gemp1d.1} parent=0 // pred_check_branch
    %554 = sbr.rel (0) target = $region25
  $region24: #{gemp1d.1} parent=0 // pred_region
    _
  $region25: #{gemp1d.1} parent=0 // pred_fallthru
    _

</llo_original>
